<compile_context>
chip_gen: v6e
topology: v6e:2x2x1
jax: 0.10.0
libtpu: 0.0.40
codegen_flags: <defaults>
</compile_context>

<pallas_src>
import functools
import math

import numpy as np
import jax
import jax.numpy as jnp
from jax import lax
from jax.experimental import pallas as pl
from jax.experimental.pallas import tpu as pltpu


def _ceil_to(x, m):
    return ((x + m - 1) // m) * m


def _vmem_limit_bytes():
    """Scoped-VMEM budget: ~3/4 of physical, capped at 96 MiB.
    -> ~96 MiB on v5e/v6e (128 MiB physical), ~48 MiB on v7x (64 MiB / TC)."""
    try:
        cap = int(pltpu.get_tpu_info().vmem_capacity_bytes)
    except Exception:
        cap = 128 * 1024 * 1024
    return int(max(32 * 1024 * 1024, min(96 * 1024 * 1024, cap * 3 // 4)))


def _invariant_spec(shape, index_map, single_buffer):
    # Grid-invariant operands: constant index_map, so double-buffering buys
    # nothing. Buffered(1) halves their VMEM footprint (critical on v7x).
    if single_buffer:
        return pl.BlockSpec(shape, index_map, pipeline_mode=pl.Buffered(1))
    return pl.BlockSpec(shape, index_map)


# ---------------------------------------------------------------------------
# Kernel A: fused QKV node projection (parallel over node tiles).
# ---------------------------------------------------------------------------
def _qkv_proj_kernel(h_ref, w_ref, b_ref, q_ref, kv_ref, *, hd_pad):
    qkv = jnp.dot(h_ref[...], w_ref[...],
                  preferred_element_type=jnp.float32) + b_ref[...]
    q_ref[...] = qkv[:, :hd_pad].astype(q_ref.dtype)       # Q table
    kv_ref[...] = qkv[:, hd_pad:].astype(kv_ref.dtype)      # [K | V] table


# ---------------------------------------------------------------------------
# Kernel B: edge attention + scatter-accumulate into per-split node slabs.
# ---------------------------------------------------------------------------
def _edge_kernel(src_ref, dstc_ref, dstr_ref, e_ref, we_ref, be_ref,
                 q_ref, kv_ref, e_out_ref, acc_ref, *,
                 num_heads, d_pad, z_rep, n_pad, tile_e, tiles_per_split,
                 num_edges):
    hd_pad = num_heads * d_pad
    c = pl.program_id(0)          # edge-split ("parallel" axis, 2nd TC on v7x)
    t = pl.program_id(1)          # edge tile within split ("arbitrary" axis)

    @pl.when(t == 0)
    def _init():
        acc_ref[...] = jnp.zeros_like(acc_ref)

    # proj_e fused into the edge tile (bf16 MXU, f32 accumulation).
    proj_e = jnp.dot(e_ref[...], we_ref[...],
                     preferred_element_type=jnp.float32) + be_ref[...]

    # Per-tile one-hot gather operands built on the fly from the index tiles.
    src = src_ref[...]                                       # [TE, 1] int32
    dst_col = dstc_ref[...]                                  # [TE, 1] int32
    dst_row = dstr_ref[...]                                  # [1, TE] int32
    iota_en = lax.broadcasted_iota(jnp.int32, (tile_e, n_pad), 1)
    src_oh = (iota_en == src).astype(jnp.bfloat16)           # [TE, N]
    dst_oh = (iota_en == dst_col).astype(jnp.bfloat16)       # [TE, N]

    # Gather K/V rows at edge sources and Q rows at edge destinations (MXU).
    kv_src = jnp.dot(src_oh, kv_ref[...], preferred_element_type=jnp.float32)
    q_dst = jnp.dot(dst_oh, q_ref[...], preferred_element_type=jnp.float32)
    k_src = kv_src[:, :hd_pad]
    v_src = kv_src[:, hd_pad:]

    # score = K_src * Q_dst / sqrt(D) * proj_e  (1/sqrt(D) folded into K weights).
    score = k_src * q_dst * proj_e                           # [TE, HD] f32
    e_out_ref[...] = score.astype(e_out_ref.dtype)

    # Per-head sum over D, clamp, exp; mask padded edge rows to zero.
    s = jnp.sum(score.reshape(tile_e, num_heads, d_pad), axis=-1)   # [TE, H]
    a = jnp.exp(jnp.clip(s, -5.0, 5.0))                             # [TE, H]
    gid0 = (c * tiles_per_split + t) * tile_e
    edge_ids = lax.broadcasted_iota(jnp.int32, (tile_e, 1), 0) + gid0
    a = jnp.where(edge_ids < num_edges, a, 0.0)

    # Scatter payload: [a*V (HD lanes) | a replicated z_rep lanes per head].
    # The z block is H*z_rep = lcm(H,128) lanes -- much narrower than HD.
    a_v = jnp.broadcast_to(a[:, :, None],
                           (tile_e, num_heads, d_pad)).reshape(tile_e, hd_pad)
    a_z = jnp.broadcast_to(a[:, :, None],
                           (tile_e, num_heads, z_rep)).reshape(tile_e,
                                                               num_heads * z_rep)
    contrib = jnp.concatenate([a_v * v_src, a_z], axis=1).astype(jnp.bfloat16)

    # Transposed one-hot built directly in [N, TE] layout (no relayout), then a
    # plain MXU matmul scatters-accumulates into this split's node slab.
    iota_ne = lax.broadcasted_iota(jnp.int32, (n_pad, tile_e), 0)
    dst_oh_t = (iota_ne == dst_row).astype(jnp.bfloat16)     # [N, TE]
    acc_ref[...] += jnp.dot(dst_oh_t, contrib,
                            preferred_element_type=jnp.float32)


# ---------------------------------------------------------------------------
# Wrapper
# ---------------------------------------------------------------------------
def mha_forward(h, e, src_idx, dst_idx, params, num_heads, out_dim,
                *, node_tile=512, edge_tile=512, num_splits=2):
    N, in_dim = h.shape
    E = e.shape[0]
    H, D = num_heads, out_dim
    f32, bf16 = jnp.float32, jnp.bfloat16

    # Lane-dense padding: d_pad chosen so H * d_pad is a multiple of 128.
    step = 128 // math.gcd(H, 128)
    d_pad = _ceil_to(D, step)
    hd_pad = H * d_pad
    # Shrunken z block: per-head weight replicated `step` lanes -> lcm(H, 128).
    z_rep = step
    z_width = H * z_rep

    # Tile sizes / padded extents.
    tn = _ceil_to(min(node_tile, _ceil_to(N, 8)), 8)
    n_pad = _ceil_to(N, tn)
    te = _ceil_to(min(edge_tile, _ceil_to(E, 128)), 128)     # te multiple of 128
    tiles_total = _ceil_to(E, te) // te
    tiles_per_split = -(-tiles_total // num_splits)
    e_pad = num_splits * tiles_per_split * te

    def pad_w(w, b, scale=1.0):
        w3 = (w * scale).reshape(in_dim, H, D)
        b3 = (b * scale).reshape(1, H, D)
        wp = jnp.zeros((in_dim, H, d_pad), f32).at[:, :, :D].set(w3)
        bp = jnp.zeros((1, H, d_pad), f32).at[:, :, :D].set(b3)
        return wp.reshape(in_dim, hd_pad), bp.reshape(1, hd_pad)

    inv_scale = 1.0 / math.sqrt(D)
    wq_p, bq_p = pad_w(params['wq'], params['bq'])
    wk_p, bk_p = pad_w(params['wk'], params['bk'], scale=inv_scale)  # fold 1/sqrt(D)
    wv_p, bv_p = pad_w(params['wv'], params['bv'])
    we_p, be_p = pad_w(params['we'], params['be'])

    w_qkv = jnp.concatenate([wq_p, wk_p, wv_p], axis=1).astype(bf16)  # [in, 3*HD]
    b_qkv = jnp.concatenate([bq_p, bk_p, bv_p], axis=1)               # [1, 3*HD] f32
    w_e = we_p.astype(bf16)
    b_e = be_p

    # Streamed HBM operands pre-cast to bf16 (halves per-tile DMA bytes).
    h_p = jnp.zeros((n_pad, in_dim), bf16).at[:N].set(h.astype(bf16))
    e_p = jnp.zeros((e_pad, in_dim), bf16).at[:E].set(e.astype(bf16))
    src_p = jnp.zeros((e_pad, 1), jnp.int32).at[:E, 0].set(src_idx.astype(jnp.int32))
    dst_p = jnp.zeros((e_pad, 1), jnp.int32).at[:E, 0].set(dst_idx.astype(jnp.int32))
    dst_row_p = dst_p.reshape(1, e_pad)   # lane-major copy for transposed scatter

    vmem_limit = _vmem_limit_bytes()

    def run(single_buffer):
        cparams_a = pltpu.CompilerParams(
            dimension_semantics=("parallel",), vmem_limit_bytes=vmem_limit)
        cparams_b = pltpu.CompilerParams(
            dimension_semantics=("parallel", "arbitrary"),
            vmem_limit_bytes=vmem_limit)

        # --- Kernel A: fused QKV node projection ---
        q_tbl, kv_tbl = pl.pallas_call(
            functools.partial(_qkv_proj_kernel, hd_pad=hd_pad),
            grid=(n_pad // tn,),
            in_specs=[
                pl.BlockSpec((tn, in_dim), lambda i: (i, 0)),
                _invariant_spec((in_dim, 3 * hd_pad), lambda i: (0, 0), single_buffer),
                _invariant_spec((1, 3 * hd_pad), lambda i: (0, 0), single_buffer),
            ],
            out_specs=(
                pl.BlockSpec((tn, hd_pad), lambda i: (i, 0)),
                pl.BlockSpec((tn, 2 * hd_pad), lambda i: (i, 0)),
            ),
            out_shape=(
                jax.ShapeDtypeStruct((n_pad, hd_pad), bf16),        # Q table
                jax.ShapeDtypeStruct((n_pad, 2 * hd_pad), bf16),    # [K | V] table
            ),
            compiler_params=cparams_a,
        )(h_p, w_qkv, b_qkv)

        # --- Kernel B: edge attention + aggregation (split x edge-tile grid) ---
        tps = tiles_per_split
        e_out_p, acc_p = pl.pallas_call(
            functools.partial(_edge_kernel, num_heads=H, d_pad=d_pad, z_rep=z_rep,
                              n_pad=n_pad, tile_e=te, tiles_per_split=tps,
                              num_edges=E),
            grid=(num_splits, tps),
            in_specs=[
                pl.BlockSpec((te, 1), lambda c, t: (c * tps + t, 0)),      # src
                pl.BlockSpec((te, 1), lambda c, t: (c * tps + t, 0)),      # dst (col)
                pl.BlockSpec((1, te), lambda c, t: (0, c * tps + t)),      # dst (row)
                pl.BlockSpec((te, in_dim), lambda c, t: (c * tps + t, 0)),  # e feats
                _invariant_spec((in_dim, hd_pad), lambda c, t: (0, 0), single_buffer),
                _invariant_spec((1, hd_pad), lambda c, t: (0, 0), single_buffer),
                _invariant_spec((n_pad, hd_pad), lambda c, t: (0, 0), single_buffer),
                _invariant_spec((n_pad, 2 * hd_pad), lambda c, t: (0, 0), single_buffer),
            ],
            out_specs=(
                pl.BlockSpec((te, hd_pad), lambda c, t: (c * tps + t, 0)),       # e_out
                pl.BlockSpec((n_pad, hd_pad + z_width), lambda c, t: (c, 0)),    # [wV|z]
            ),
            out_shape=(
                jax.ShapeDtypeStruct((e_pad, hd_pad), bf16),
                jax.ShapeDtypeStruct((num_splits * n_pad, hd_pad + z_width), f32),
            ),
            compiler_params=cparams_b,
        )(src_p, dst_p, dst_row_p, e_p, w_e, b_e, q_tbl, kv_tbl)
        return e_out_p, acc_p

    try:
        e_out_p, acc_p = run(single_buffer=True)
    except Exception:
        # Fallback if this JAX build rejects pipeline_mode=pl.Buffered(1).
        e_out_p, acc_p = run(single_buffer=False)

    # Tiny XLA epilogue: combine the per-split partials and normalize (exact f32).
    acc = acc_p.reshape(num_splits, n_pad, hd_pad + z_width).sum(axis=0)
    wV = acc[:, :hd_pad].reshape(n_pad, H, d_pad)
    z = acc[:, hd_pad:].reshape(n_pad, H, z_rep)[:, :, :1]          # [n_pad, H, 1]
    h_out = (wV / (z + 1e-6))[:N, :, :D]
    e_out = e_out_p[:E].astype(f32).reshape(E, H, d_pad)[:, :, :D]
    return h_out, e_out


def init_params(key, in_dim, out_dim, num_heads, use_bias=True):
    """Deterministic synthetic parameters. Weights stored as [in_dim, H*D]
    (i.e. already transposed relative to torch's nn.Linear.weight)."""
    HD = out_dim * num_heads
    bound = 1.0 / np.sqrt(in_dim)
    keys = jax.random.split(key, 8)

    def lin(kw, kb):
        w = jax.random.uniform(kw, (in_dim, HD), jnp.float32, -bound, bound)
        if use_bias:
            b = jax.random.uniform(kb, (1, HD), jnp.float32, -bound, bound)
        else:
            b = jnp.zeros((1, HD), jnp.float32)
        return w, b

    wq, bq = lin(keys[0], keys[1])
    wk, bk = lin(keys[2], keys[3])
    wv, bv = lin(keys[4], keys[5])
    we, be = lin(keys[6], keys[7])
    return dict(wq=wq, bq=bq, wk=wk, bk=bk, wv=wv, bv=bv, we=we, be=be)


def reference(h, e, src, dst, params, num_heads, out_dim):
    """Pure-JAX f32 reference mirroring the torch/DGL forward."""
    N = h.shape[0]
    E = e.shape[0]
    D = out_dim
    H = num_heads
    Q = (h @ params['wq'] + params['bq']).reshape(N, H, D)
    K = (h @ params['wk'] + params['bk']).reshape(N, H, D)
    V = (h @ params['wv'] + params['bv']).reshape(N, H, D)
    P = (e @ params['we'] + params['be']).reshape(E, H, D)
    score = K[src] * Q[dst] / np.sqrt(D)         # src_dot_dst + scaling
    score = score * P                            # imp_exp_attn
    e_out = score                                # out_edge_features
    a = jnp.exp(jnp.clip(score.sum(-1, keepdims=True), -5.0, 5.0))  # exp()
    wV = jnp.zeros((N, H, D), jnp.float32).at[dst].add(V[src] * a)
    z = jnp.zeros((N, H, 1), jnp.float32).at[dst].add(a)
    h_out = wV / (z + 1e-6)
    return h_out, e_out


if __name__ == "__main__":
    key = jax.random.PRNGKey(0)
    N, E = 8, 16
    in_dim, out_dim, num_heads = 32, 8, 4

    k1, k2, k3, k4, k5 = jax.random.split(key, 5)
    h = jax.random.normal(k1, (N, in_dim), jnp.float32)
    e = jax.random.normal(k2, (E, in_dim), jnp.float32)
    src = jax.random.randint(k3, (E,), 0, N)
    dst = jax.random.randint(k4, (E,), 0, N)
    params = init_params(k5, in_dim, out_dim, num_heads, use_bias=True)

    h_out, e_out = mha_forward(h, e, src, dst, params, num_heads, out_dim)
    jax.block_until_ready((h_out, e_out))

    h_ref, e_ref = reference(h, e, src, dst, params, num_heads, out_dim)
    # bf16 matmul inputs / bf16 e_out store -> compare with a few-% tolerance.
    np.testing.assert_allclose(np.asarray(h_out), np.asarray(h_ref),
                               rtol=5e-2, atol=5e-2)
    np.testing.assert_allclose(np.asarray(e_out), np.asarray(e_ref),
                               rtol=5e-2, atol=5e-2)
    print("KERNEL_OK")
</pallas_src>

<mosaic_0001>
module attributes {stable_mosaic.version = 11 : i64} {
  func.func @_qkv_proj_kernel(%arg0: i32, %arg1: memref<8x32xbf16, #tpu.memory_space<vmem>>, %arg2: memref<32x384xbf16, #tpu.memory_space<vmem>>, %arg3: memref<1x384xf32, #tpu.memory_space<vmem>>, %arg4: memref<8x128xbf16, #tpu.memory_space<vmem>>, %arg5: memref<8x256xbf16, #tpu.memory_space<vmem>>) attributes {dimension_semantics = [#tpu.dimension_semantics<parallel>], iteration_bounds = array<i64: 1>, scalar_prefetch = 0 : i64, scratch_operands = 0 : i64, tpu.core_type = #tpu.core_type<tc>, window_params = [{transform_indices = @transform_0, window_bounds = array<i64: 8, 32>}, {pipeline_mode = #tpu.pipeline_mode<synchronous>, transform_indices = @transform_1, window_bounds = array<i64: 32, 384>}, {pipeline_mode = #tpu.pipeline_mode<synchronous>, transform_indices = @transform_2, window_bounds = array<i64: 1, 384>}, {transform_indices = @transform_3, window_bounds = array<i64: 8, 128>}, {transform_indices = @transform_4, window_bounds = array<i64: 8, 256>}]} {
    %c0 = arith.constant 0 : index
    %c0_0 = arith.constant 0 : index
    %0 = vector.load %arg1[%c0, %c0_0] : memref<8x32xbf16, #tpu.memory_space<vmem>>, vector<8x32xbf16>
    %c0_1 = arith.constant 0 : index
    %c0_2 = arith.constant 0 : index
    %1 = vector.load %arg2[%c0_1, %c0_2] : memref<32x384xbf16, #tpu.memory_space<vmem>>, vector<32x384xbf16>
    %cst = arith.constant dense<0.000000e+00> : vector<8x384xf32>
    %2 = tpu.matmul %0, %1, %cst {dimension_numbers = #tpu.dot_dimension_numbers<[1], [0], [0], [1], [0, 0, 1, 1], [], []>} : vector<8x32xbf16>, vector<32x384xbf16>, vector<8x384xf32> -> vector<8x384xf32>
    %c0_3 = arith.constant 0 : index
    %c0_4 = arith.constant 0 : index
    %3 = vector.load %arg3[%c0_3, %c0_4] : memref<1x384xf32, #tpu.memory_space<vmem>>, vector<1x384xf32>
    %4 = vector.broadcast %3 : vector<1x384xf32> to vector<8x384xf32>
    %5 = arith.addf %2, %4 : vector<8x384xf32>
    %6 = vector.extract_strided_slice %5 {offsets = [0, 0], sizes = [8, 128], strides = [1, 1]} : vector<8x384xf32> to vector<8x128xf32>
    %7 = arith.truncf %6 : vector<8x128xf32> to vector<8x128xbf16>
    %c0_5 = arith.constant 0 : index
    %c0_6 = arith.constant 0 : index
    %8 = vector.load %arg4[%c0_5, %c0_6] : memref<8x128xbf16, #tpu.memory_space<vmem>>, vector<8x128xbf16>
    tpu.vector_store %arg4[%c0_5, %c0_6], %7 {strides = array<i32>} : memref<8x128xbf16, #tpu.memory_space<vmem>>, vector<8x128xbf16>,
    %9 = vector.extract_strided_slice %5 {offsets = [0, 128], sizes = [8, 256], strides = [1, 1]} : vector<8x384xf32> to vector<8x256xf32>
    %10 = arith.truncf %9 : vector<8x256xf32> to vector<8x256xbf16>
    %c0_7 = arith.constant 0 : index
    %c0_8 = arith.constant 0 : index
    %11 = vector.load %arg5[%c0_7, %c0_8] : memref<8x256xbf16, #tpu.memory_space<vmem>>, vector<8x256xbf16>
    tpu.vector_store %arg5[%c0_7, %c0_8], %10 {strides = array<i32>} : memref<8x256xbf16, #tpu.memory_space<vmem>>, vector<8x256xbf16>,
    return
  }
  func.func @transform_0(%arg0: i32) -> (i32, i32) {
    %c0_i32 = arith.constant 0 : i32
    %c0_i32_0 = arith.constant 0 : i32
    return %arg0, %c0_i32 : i32, i32
  }
  func.func @transform_1(%arg0: i32) -> (i32, i32) {
    %c0_i32 = arith.constant 0 : i32
    %c0_i32_0 = arith.constant 0 : i32
    %c0_i32_1 = arith.constant 0 : i32
    return %c0_i32, %c0_i32_0 : i32, i32
  }
  func.func @transform_2(%arg0: i32) -> (i32, i32) {
    %c0_i32 = arith.constant 0 : i32
    %c0_i32_0 = arith.constant 0 : i32
    %c0_i32_1 = arith.constant 0 : i32
    return %c0_i32, %c0_i32_0 : i32, i32
  }
  func.func @transform_3(%arg0: i32) -> (i32, i32) {
    %c0_i32 = arith.constant 0 : i32
    %c0_i32_0 = arith.constant 0 : i32
    return %arg0, %c0_i32 : i32, i32
  }
  func.func @transform_4(%arg0: i32) -> (i32, i32) {
    %c0_i32 = arith.constant 0 : i32
    %c0_i32_0 = arith.constant 0 : i32
    return %arg0, %c0_i32 : i32, i32
  }
}

module attributes {stable_mosaic.version = 11 : i64} {
  func.func @_qkv_proj_kernel(%arg0: i32, %arg1: memref<8x32xbf16, #tpu.memory_space<vmem>>, %arg2: memref<32x384xbf16, #tpu.memory_space<vmem>>, %arg3: memref<1x384xf32, #tpu.memory_space<vmem>>, %arg4: memref<8x128xbf16, #tpu.memory_space<vmem>>, %arg5: memref<8x256xbf16, #tpu.memory_space<vmem>>) attributes {dimension_semantics = [#tpu.dimension_semantics<parallel>], iteration_bounds = array<i64: 1>, scalar_prefetch = 0 : i64, scratch_operands = 0 : i64, tpu.core_type = #tpu.core_type<tc>, window_params = [{transform_indices = @transform_0, window_bounds = array<i64: 8, 32>}, {pipeline_mode = #tpu.pipeline_mode<synchronous>, transform_indices = @transform_1, window_bounds = array<i64: 32, 384>}, {pipeline_mode = #tpu.pipeline_mode<synchronous>, transform_indices = @transform_2, window_bounds = array<i64: 1, 384>}, {transform_indices = @transform_3, window_bounds = array<i64: 8, 128>}, {transform_indices = @transform_4, window_bounds = array<i64: 8, 256>}]} {
    %c0 = arith.constant 0 : index
    %c0_0 = arith.constant 0 : index
    %0 = vector.load %arg1[%c0, %c0_0] : memref<8x32xbf16, #tpu.memory_space<vmem>>, vector<8x32xbf16>
    %c0_1 = arith.constant 0 : index
    %c0_2 = arith.constant 0 : index
    %1 = vector.load %arg2[%c0_1, %c0_2] : memref<32x384xbf16, #tpu.memory_space<vmem>>, vector<32x384xbf16>
    %cst = arith.constant dense<0.000000e+00> : vector<8x384xf32>
    %2 = tpu.matmul %0, %1, %cst {dimension_numbers = #tpu.dot_dimension_numbers<[1], [0], [0], [1], [0, 0, 1, 1], [], []>} : vector<8x32xbf16>, vector<32x384xbf16>, vector<8x384xf32> -> vector<8x384xf32>
    %c0_3 = arith.constant 0 : index
    %c0_4 = arith.constant 0 : index
    %3 = vector.load %arg3[%c0_3, %c0_4] : memref<1x384xf32, #tpu.memory_space<vmem>>, vector<1x384xf32>
    %4 = vector.broadcast %3 : vector<1x384xf32> to vector<8x384xf32>
    %5 = arith.addf %2, %4 : vector<8x384xf32>
    %6 = vector.extract_strided_slice %5 {offsets = [0, 0], sizes = [8, 128], strides = [1, 1]} : vector<8x384xf32> to vector<8x128xf32>
    %7 = arith.truncf %6 : vector<8x128xf32> to vector<8x128xbf16>
    %c0_5 = arith.constant 0 : index
    %c0_6 = arith.constant 0 : index
    %8 = vector.load %arg4[%c0_5, %c0_6] : memref<8x128xbf16, #tpu.memory_space<vmem>>, vector<8x128xbf16>
    tpu.vector_store %arg4[%c0_5, %c0_6], %7 {strides = array<i32>} : memref<8x128xbf16, #tpu.memory_space<vmem>>, vector<8x128xbf16>,
    %9 = vector.extract_strided_slice %5 {offsets = [0, 128], sizes = [8, 256], strides = [1, 1]} : vector<8x384xf32> to vector<8x256xf32>
    %10 = arith.truncf %9 : vector<8x256xf32> to vector<8x256xbf16>
    %c0_7 = arith.constant 0 : index
    %c0_8 = arith.constant 0 : index
    %11 = vector.load %arg5[%c0_7, %c0_8] : memref<8x256xbf16, #tpu.memory_space<vmem>>, vector<8x256xbf16>
    tpu.vector_store %arg5[%c0_7, %c0_8], %10 {strides = array<i32>} : memref<8x256xbf16, #tpu.memory_space<vmem>>, vector<8x256xbf16>,
    return
  }
  func.func @transform_0(%arg0: i32) -> (i32, i32) {
    %c0_i32 = arith.constant 0 : i32
    %c0_i32_0 = arith.constant 0 : i32
    return %arg0, %c0_i32 : i32, i32
  }
  func.func @transform_1(%arg0: i32) -> (i32, i32) {
    %c0_i32 = arith.constant 0 : i32
    %c0_i32_0 = arith.constant 0 : i32
    %c0_i32_1 = arith.constant 0 : i32
    return %c0_i32, %c0_i32_0 : i32, i32
  }
  func.func @transform_2(%arg0: i32) -> (i32, i32) {
    %c0_i32 = arith.constant 0 : i32
    %c0_i32_0 = arith.constant 0 : i32
    %c0_i32_1 = arith.constant 0 : i32
    return %c0_i32, %c0_i32_0 : i32, i32
  }
  func.func @transform_3(%arg0: i32) -> (i32, i32) {
    %c0_i32 = arith.constant 0 : i32
    %c0_i32_0 = arith.constant 0 : i32
    return %arg0, %c0_i32 : i32, i32
  }
  func.func @transform_4(%arg0: i32) -> (i32, i32) {
    %c0_i32 = arith.constant 0 : i32
    %c0_i32_0 = arith.constant 0 : i32
    return %arg0, %c0_i32 : i32, i32
  }
}

</mosaic_0001>

<llo_original>
// kernel: tpu_custom_call.1
$region0: #{tpu_custom_call.1}
  #allocation0 [shape = 'u32[]', space=smem, size = 0x4, offset = 0x4, fixed_abs, tag = 'smem constant byte address 0x4 - core index']
  #allocation1 [shape = 'u32[144,128]{1,0:T(1,128)}', space=vmem, size = 0x12000, scoped, tag = 'internal scratch']
  %s0 = inlined_call_operand.hbm [shape: bf16[8,32], index: 0, kind: input, shape index: {}]
  %s1 = inlined_call_operand.hbm [shape: bf16[32,384], index: 1, kind: input, shape index: {}]
  %s2 = inlined_call_operand.vmem [shape: f32[1,384], index: 2, kind: input, shape index: {}]
  %s3 = inlined_call_operand.hbm [shape: bf16[8,128], index: 3, kind: output, shape index: {0}]
  %s4 = inlined_call_operand.hbm [shape: bf16[8,256], index: 4, kind: output, shape index: {1}]
  %5 = xla_tuple %s3, %s4
  %s6 = sld [smem:[#allocation0]]
  $region38: #{tpu_custom_call.1} parent=0
    _
  %s8 = ssub.s32 1, %s6
  %s9 = scalar_select 0, %s8, %s6
  $region1: #{tpu_custom_call.1} parent=0
    #allocation2 [shape = 'u8[2048]{0}', space=vmem, size = 0x800, scoped, tag = 'input window, operand 0, single buffered']
    #allocation3 [shape = 's32[1]{0}', space=sflag, size = 0x4, scoped, tag = 'scoped memory for tpu_custom_call.1']
    #allocation4 [shape = 's32[1]{0}', space=sflag, size = 0x4, scoped, tag = 'scoped memory for tpu_custom_call.1']
    #allocation5 [shape = 'u8[24576]{0}', space=vmem, size = 0x6000, scoped, tag = 'input window, operand 1, single buffered']
    #allocation6 [shape = 's32[1]{0}', space=sflag, size = 0x4, scoped, tag = 'scoped memory for tpu_custom_call.1']
    #allocation7 [shape = 'u8[2048]{0}', space=vmem, size = 0x800, scoped, tag = 'output window, operand 0, single buffered']
    #allocation8 [shape = 'u8[4096]{0}', space=vmem, size = 0x1000, scoped, tag = 'output window, operand 1, single buffered']
    #allocation9 [shape = 's32[1]{0}', space=sflag, size = 0x4, scoped, tag = 'scoped memory for tpu_custom_call.1']
    %10 = vsyncpa [#allocation3], 0
    %11 = vsyncpa [#allocation6], 0
    %12 = vsyncpa [#allocation4], 0
    %13 = vsyncpa [#allocation9], 0
    // Predicated region
    $region2: #{tpu_custom_call.1} parent=1 // pred_check
      _
    $region3: #{tpu_custom_call.1} parent=1 // pred_check_branch
      %15 = sbr.rel (0) target = $region5
    $region4: #{tpu_custom_call.1} parent=1 // pred_region
      %s17 = ssub.s32 64, 64
      %18 = vsyncadd [#allocation3], %s17
      %s20 = sshll.u32 [#allocation2], 4
      %s21 = int_to_ptr.vmem [resolvable:$true] %s20
      %23 = dma.hbm_to_vmem [thread:$0]  %s0, 64, %s21, [#allocation3]
    $region5: #{tpu_custom_call.1} parent=1 // pred_fallthru
      _
    // Predicated region
    $region6: #{tpu_custom_call.1} parent=1 // pred_check
      _
    $region7: #{tpu_custom_call.1} parent=1 // pred_check_branch
      %25 = sbr.rel (0) target = $region9
    $region8: #{tpu_custom_call.1} parent=1 // pred_region
      %s27 = ssub.s32 768, 768
      %28 = vsyncadd [#allocation6], %s27
      %s29 = sshll.u32 [#allocation5], 4
      %s30 = int_to_ptr.vmem [resolvable:$true] %s29
      %35 = dma.hbm_to_vmem [thread:$0]  %s1, 768, %s30, [#allocation6], 192, 192, 12
    $region9: #{tpu_custom_call.1} parent=1 // pred_fallthru
      _
    // Predicated region
    $region10: #{tpu_custom_call.1} parent=1 // pred_check
      _
    $region11: #{tpu_custom_call.1} parent=1 // pred_check_branch
      %37 = sbr.rel (0) target = $region13
    $region12: #{tpu_custom_call.1} parent=1 // pred_region
      _
    $region13: #{tpu_custom_call.1} parent=1 // pred_fallthru
      _
    // Predicated region
    $region14: #{tpu_custom_call.1} parent=1 // pred_check
      _
    $region15: #{tpu_custom_call.1} parent=1 // pred_check_branch
      %39 = sbr.rel (0) target = $region17
    $region16: #{tpu_custom_call.1} parent=1 // pred_region
      %40 = dma.done [#allocation3], 64
    $region17: #{tpu_custom_call.1} parent=1 // pred_fallthru
      _
    // Predicated region
    $region18: #{tpu_custom_call.1} parent=1 // pred_check
      _
    $region19: #{tpu_custom_call.1} parent=1 // pred_check_branch
      %42 = sbr.rel (0) target = $region21
    $region20: #{tpu_custom_call.1} parent=1 // pred_region
      %43 = dma.done [#allocation6], 768
    $region21: #{tpu_custom_call.1} parent=1 // pred_fallthru
      _
    %v45 = vld [vmem:[#allocation2] sm:$0xf]
    %v46 = vld [vmem:[#allocation5] sm:$0xff]
    %v47 = vld [vmem:[#allocation5 + $0x8] sm:$0xf]
    %v48 = vld [vmem:[#allocation5 + $0xc] sm:$0xff]
    %v49 = vld [vmem:[#allocation5 + $0x14] sm:$0xf]
    %v50 = vld [vmem:[#allocation5 + $0x18] sm:$0xff]
    %v51 = vld [vmem:[#allocation5 + $0x20] sm:$0xf]
    %v52 = vld [vmem:[#allocation5 + $0x24] sm:$0xff]
    %v53 = vld [vmem:[#allocation5 + $0x2c] sm:$0xf]
    %v54 = vld [vmem:[%s2] sm:$0x7]
    %v56 = vlaneseq
    %v57 = vshrl.u32 %v56, 7
    %v58 = vsub.s32 0, %v57
    %v59 = vrot.slane %v54, %v58
    %v60 = vlaneseq
    %v61 = vshrl.u32 %v60, 7
    %v62 = vsub.s32 1, %v61
    %v63 = vrot.slane %v54, %v62
    %v64 = vlaneseq
    %v65 = vshrl.u32 %v64, 7
    %v66 = vsub.s32 2, %v65
    %v67 = vrot.slane %v54, %v66
    %v79 = vunpack.c.l.b16 %v46
    %v80 = vunpack.c.h.b16 %v46
    %v81 = vunpack.c.l.b16 %v47
    %v82 = vunpack.c.l.b16 %v48
    %v83 = vunpack.c.h.b16 %v48
    %v84 = vunpack.c.l.b16 %v49
    %v85 = vunpack.c.l.b16 %v50
    %v86 = vunpack.c.h.b16 %v50
    %v87 = vunpack.c.l.b16 %v51
    %v88 = vunpack.c.l.b16 %v52
    %v89 = vunpack.c.h.b16 %v52
    %v90 = vunpack.c.l.b16 %v53
    %v91 = vpack.c.b16 %v82, %v79
    %v92 = vpack.c.b16 %v83, %v80
    %v93 = vpack.c.b16 %v84, %v81
    %v94 = vpack.c.b16 %v88, %v85
    %v95 = vpack.c.b16 %v89, %v86
    %v96 = vpack.c.b16 %v90, %v87
    %vm103 = vcmask 261120
    %v105 = vsel %vm103, %v45, 0
    %107 = vmatprep.subr.bf16.mxu0 0
    %108 = vmatpush1.bf16.msra.mxu0 0
    %109 = vmatprep.subr.bf16.mxu0 0
    %110 = vmatpush1.bf16.msra.mxu0 0
    %111 = vmatprep.subr.bf16.mxu0 0
    %112 = vmatpush1.bf16.msra.mxu0 0
    %113 = vmatprep.subr.bf16.mxu0 0
    %114 = vmatpush1.bf16.msra.mxu0 0
    %115 = vmatprep.subr.bf16.mxu0 0
    %116 = vmatpush1.bf16.msra.mxu0 0
    %117 = vmatprep.subr.bf16.mxu0 0
    %118 = vmatpush1.bf16.msra.mxu0 0
    %119 = vmatprep.subr.bf16.mxu0 %v95
    %120 = vmatpush1.bf16.msra.mxu0 %v94
    %121 = vmatprep.subr.bf16.mxu0 %v92
    %122 = vmatpush1.bf16.msra.mxu0 %v91
    %123 = vmatprep.subr.bf16.mxu0 0
    %124 = vmatpush2.bf16.msra.mxu0 0
    %125 = vmatprep.subr.bf16.mxu0 0
    %126 = vmatpush2.bf16.msra.mxu0 0
    %127 = vmatprep.subr.bf16.mxu0 0
    %128 = vmatpush2.bf16.msra.mxu0 0
    %129 = vmatprep.subr.bf16.mxu0 0
    %130 = vmatpush2.bf16.msra.mxu0 0
    %131 = vmatprep.subr.bf16.mxu0 0
    %132 = vmatpush2.bf16.msra.mxu0 0
    %133 = vmatprep.subr.bf16.mxu0 0
    %134 = vmatpush2.bf16.msra.mxu0 0
    %135 = vmatprep.subr.bf16.mxu0 0
    %136 = vmatpush2.bf16.msra.mxu0 0
    %137 = vmatprep.subr.bf16.mxu0 0
    %138 = vmatpush2.bf16.msra.mxu0 0
    %139 = vmatprep.mubr.bf16.mxu0 0
    %140 = vmatmul.mubr.bf16.gmra.mxu0 %v105
    %v141 = vpop.f32.mrf.mxu0
    %v142 = vadd.f32 %v59, %v141
    %v143 = vpop.f32.mrf.mxu0
    %v144 = vadd.f32 %v63, %v143
    %v145 = vpop.f32.mrf.mxu0
    %v146 = vpop.f32.mrf.mxu0
    %147 = vdwg.mxu0
    %148 = vmatprep.subr.bf16.mxu0 0
    %149 = vmatpush1.bf16.msra.mxu0 0
    %150 = vmatprep.subr.bf16.mxu0 0
    %151 = vmatpush1.bf16.msra.mxu0 0
    %152 = vmatprep.subr.bf16.mxu0 0
    %153 = vmatpush1.bf16.msra.mxu0 0
    %154 = vmatprep.subr.bf16.mxu0 0
    %155 = vmatpush1.bf16.msra.mxu0 0
    %156 = vmatprep.subr.bf16.mxu0 0
    %157 = vmatpush1.bf16.msra.mxu0 0
    %158 = vmatprep.subr.bf16.mxu0 0
    %159 = vmatpush1.bf16.msra.mxu0 0
    %160 = vmatprep.subr.bf16.mxu0 0
    %161 = vmatpush1.bf16.msra.mxu0 %v96
    %162 = vmatprep.subr.bf16.mxu0 0
    %163 = vmatpush1.bf16.msra.mxu0 %v93
    %164 = vmatprep.subr.bf16.mxu0 0
    %165 = vmatpush2.bf16.msra.mxu0 0
    %166 = vmatprep.subr.bf16.mxu0 0
    %167 = vmatpush2.bf16.msra.mxu0 0
    %168 = vmatprep.subr.bf16.mxu0 0
    %169 = vmatpush2.bf16.msra.mxu0 0
    %170 = vmatprep.subr.bf16.mxu0 0
    %171 = vmatpush2.bf16.msra.mxu0 0
    %172 = vmatprep.subr.bf16.mxu0 0
    %173 = vmatpush2.bf16.msra.mxu0 0
    %174 = vmatprep.subr.bf16.mxu0 0
    %175 = vmatpush2.bf16.msra.mxu0 0
    %176 = vmatprep.subr.bf16.mxu0 0
    %177 = vmatpush2.bf16.msra.mxu0 0
    %178 = vmatprep.subr.bf16.mxu0 0
    %179 = vmatpush2.bf16.msra.mxu0 0
    %180 = vmatprep.mubr.bf16.mxu0 0
    %181 = vmatmul.mubr.bf16.gmra.mxu0 %v105
    %v182 = vpop.f32.mrf.mxu0
    %v183 = vadd.f32 %v67, %v182
    %v184 = vpop.f32.mrf.mxu0
    %v185 = vpop.f32.mrf.mxu0
    %v186 = vpop.f32.mrf.mxu0
    %187 = vdwg.mxu0
    %v188 = vpack.c.bf16 %v142, %v142
    %189 = vst [vmem:[#allocation7] sm:$0xf] %v188
    %v190 = vpack.c.bf16 %v144, %v144
    %v191 = vpack.c.bf16 %v183, %v183
    %v194 = vunpack.c.l.b16 %v190
    %v195 = vunpack.c.l.b16 %v191
    %v196 = vpack.c.b16 %v195, %v194
    %198 = vst [vmem:[#allocation8] sm:$0xff] %v196
    // Predicated region
    $region22: #{tpu_custom_call.1} parent=1 // pred_check
      _
    $region23: #{tpu_custom_call.1} parent=1 // pred_check_branch
      %200 = sbr.rel (0) target = $region25
    $region24: #{tpu_custom_call.1} parent=1 // pred_region
      %s202 = ssub.s32 64, 64
      %203 = vsyncadd [#allocation4], %s202
      %s205 = sshll.u32 [#allocation7], 4
      %s206 = int_to_ptr.vmem [resolvable:$true] %s205
      %208 = dma.vmem_to_hbm [thread:$0]  %s206, 64, %s3, [#allocation4]
    $region25: #{tpu_custom_call.1} parent=1 // pred_fallthru
      _
    // Predicated region
    $region26: #{tpu_custom_call.1} parent=1 // pred_check
      _
    $region27: #{tpu_custom_call.1} parent=1 // pred_check_branch
      %210 = sbr.rel (0) target = $region29
    $region28: #{tpu_custom_call.1} parent=1 // pred_region
      %s212 = ssub.s32 128, 128
      %213 = vsyncadd [#allocation9], %s212
      %s215 = sshll.u32 [#allocation8], 4
      %s216 = int_to_ptr.vmem [resolvable:$true] %s215
      %218 = dma.vmem_to_hbm [thread:$0]  %s216, 128, %s4, [#allocation9]
    $region29: #{tpu_custom_call.1} parent=1 // pred_fallthru
      _
    // Predicated region
    $region30: #{tpu_custom_call.1} parent=1 // pred_check
      _
    $region31: #{tpu_custom_call.1} parent=1 // pred_check_branch
      %220 = sbr.rel (0) target = $region33
    $region32: #{tpu_custom_call.1} parent=1 // pred_region
      %221 = dma.done [#allocation4], 64
    $region33: #{tpu_custom_call.1} parent=1 // pred_fallthru
      _
    // Predicated region
    $region34: #{tpu_custom_call.1} parent=1 // pred_check
      _
    $region35: #{tpu_custom_call.1} parent=1 // pred_check_branch
      %223 = sbr.rel (0) target = $region37
    $region36: #{tpu_custom_call.1} parent=1 // pred_region
      %224 = dma.done [#allocation9], 128
    $region37: #{tpu_custom_call.1} parent=1 // pred_fallthru
      _
    %225 = vsyncpa [#allocation3], 1
    %226 = vsyncpa [#allocation6], 1
    %227 = vsyncpa [#allocation4], 1
    %228 = vsyncpa [#allocation9], 1

// kernel: tpu_custom_call.1
$region0: #{tpu_custom_call.1}
  #allocation0 [shape = 'u32[]', space=smem, size = 0x4, offset = 0x4, fixed_abs, tag = 'smem constant byte address 0x4 - core index']
  #allocation1 [shape = 'u32[144,128]{1,0:T(1,128)}', space=vmem, size = 0x12000, scoped, tag = 'internal scratch']
  %s0 = inlined_call_operand.hbm [shape: bf16[8,32], index: 0, kind: input, shape index: {}]
  %s1 = inlined_call_operand.hbm [shape: bf16[32,384], index: 1, kind: input, shape index: {}]
  %s2 = inlined_call_operand.vmem [shape: f32[1,384], index: 2, kind: input, shape index: {}]
  %s3 = inlined_call_operand.hbm [shape: bf16[8,128], index: 3, kind: output, shape index: {0}]
  %s4 = inlined_call_operand.hbm [shape: bf16[8,256], index: 4, kind: output, shape index: {1}]
  %5 = xla_tuple %s3, %s4
  %s6 = sld [smem:[#allocation0]]
  $region38: #{tpu_custom_call.1} parent=0
    _
  %s8 = ssub.s32 1, %s6
  %s9 = scalar_select 0, %s8, %s6
  $region1: #{tpu_custom_call.1} parent=0
    #allocation2 [shape = 'u8[2048]{0}', space=vmem, size = 0x800, scoped, tag = 'input window, operand 0, single buffered']
    #allocation3 [shape = 's32[1]{0}', space=sflag, size = 0x4, scoped, tag = 'scoped memory for tpu_custom_call.1']
    #allocation4 [shape = 's32[1]{0}', space=sflag, size = 0x4, scoped, tag = 'scoped memory for tpu_custom_call.1']
    #allocation5 [shape = 'u8[24576]{0}', space=vmem, size = 0x6000, scoped, tag = 'input window, operand 1, single buffered']
    #allocation6 [shape = 's32[1]{0}', space=sflag, size = 0x4, scoped, tag = 'scoped memory for tpu_custom_call.1']
    #allocation7 [shape = 'u8[2048]{0}', space=vmem, size = 0x800, scoped, tag = 'output window, operand 0, single buffered']
    #allocation8 [shape = 'u8[4096]{0}', space=vmem, size = 0x1000, scoped, tag = 'output window, operand 1, single buffered']
    #allocation9 [shape = 's32[1]{0}', space=sflag, size = 0x4, scoped, tag = 'scoped memory for tpu_custom_call.1']
    %10 = vsyncpa [#allocation3], 0
    %11 = vsyncpa [#allocation6], 0
    %12 = vsyncpa [#allocation4], 0
    %13 = vsyncpa [#allocation9], 0
    // Predicated region
    $region2: #{tpu_custom_call.1} parent=1 // pred_check
      _
    $region3: #{tpu_custom_call.1} parent=1 // pred_check_branch
      %15 = sbr.rel (0) target = $region5
    $region4: #{tpu_custom_call.1} parent=1 // pred_region
      %s17 = ssub.s32 64, 64
      %18 = vsyncadd [#allocation3], %s17
      %s20 = sshll.u32 [#allocation2], 4
      %s21 = int_to_ptr.vmem [resolvable:$true] %s20
      %23 = dma.hbm_to_vmem [thread:$0]  %s0, 64, %s21, [#allocation3]
    $region5: #{tpu_custom_call.1} parent=1 // pred_fallthru
      _
    // Predicated region
    $region6: #{tpu_custom_call.1} parent=1 // pred_check
      _
    $region7: #{tpu_custom_call.1} parent=1 // pred_check_branch
      %25 = sbr.rel (0) target = $region9
    $region8: #{tpu_custom_call.1} parent=1 // pred_region
      %s27 = ssub.s32 768, 768
      %28 = vsyncadd [#allocation6], %s27
      %s29 = sshll.u32 [#allocation5], 4
      %s30 = int_to_ptr.vmem [resolvable:$true] %s29
      %35 = dma.hbm_to_vmem [thread:$0]  %s1, 768, %s30, [#allocation6], 192, 192, 12
    $region9: #{tpu_custom_call.1} parent=1 // pred_fallthru
      _
    // Predicated region
    $region10: #{tpu_custom_call.1} parent=1 // pred_check
      _
    $region11: #{tpu_custom_call.1} parent=1 // pred_check_branch
      %37 = sbr.rel (0) target = $region13
    $region12: #{tpu_custom_call.1} parent=1 // pred_region
      _
    $region13: #{tpu_custom_call.1} parent=1 // pred_fallthru
      _
    // Predicated region
    $region14: #{tpu_custom_call.1} parent=1 // pred_check
      _
    $region15: #{tpu_custom_call.1} parent=1 // pred_check_branch
      %39 = sbr.rel (0) target = $region17
    $region16: #{tpu_custom_call.1} parent=1 // pred_region
      %40 = dma.done [#allocation3], 64
    $region17: #{tpu_custom_call.1} parent=1 // pred_fallthru
      _
    // Predicated region
    $region18: #{tpu_custom_call.1} parent=1 // pred_check
      _
    $region19: #{tpu_custom_call.1} parent=1 // pred_check_branch
      %42 = sbr.rel (0) target = $region21
    $region20: #{tpu_custom_call.1} parent=1 // pred_region
      %43 = dma.done [#allocation6], 768
    $region21: #{tpu_custom_call.1} parent=1 // pred_fallthru
      _
    %v45 = vld [vmem:[#allocation2] sm:$0xf]
    %v46 = vld [vmem:[#allocation5] sm:$0xff]
    %v47 = vld [vmem:[#allocation5 + $0x8] sm:$0xf]
    %v48 = vld [vmem:[#allocation5 + $0xc] sm:$0xff]
    %v49 = vld [vmem:[#allocation5 + $0x14] sm:$0xf]
    %v50 = vld [vmem:[#allocation5 + $0x18] sm:$0xff]
    %v51 = vld [vmem:[#allocation5 + $0x20] sm:$0xf]
    %v52 = vld [vmem:[#allocation5 + $0x24] sm:$0xff]
    %v53 = vld [vmem:[#allocation5 + $0x2c] sm:$0xf]
    %v54 = vld [vmem:[%s2] sm:$0x7]
    %v56 = vlaneseq
    %v57 = vshrl.u32 %v56, 7
    %v58 = vsub.s32 0, %v57
    %v59 = vrot.slane %v54, %v58
    %v60 = vlaneseq
    %v61 = vshrl.u32 %v60, 7
    %v62 = vsub.s32 1, %v61
    %v63 = vrot.slane %v54, %v62
    %v64 = vlaneseq
    %v65 = vshrl.u32 %v64, 7
    %v66 = vsub.s32 2, %v65
    %v67 = vrot.slane %v54, %v66
    %v79 = vunpack.c.l.b16 %v46
    %v80 = vunpack.c.h.b16 %v46
    %v81 = vunpack.c.l.b16 %v47
    %v82 = vunpack.c.l.b16 %v48
    %v83 = vunpack.c.h.b16 %v48
    %v84 = vunpack.c.l.b16 %v49
    %v85 = vunpack.c.l.b16 %v50
    %v86 = vunpack.c.h.b16 %v50
    %v87 = vunpack.c.l.b16 %v51
    %v88 = vunpack.c.l.b16 %v52
    %v89 = vunpack.c.h.b16 %v52
    %v90 = vunpack.c.l.b16 %v53
    %v91 = vpack.c.b16 %v82, %v79
    %v92 = vpack.c.b16 %v83, %v80
    %v93 = vpack.c.b16 %v84, %v81
    %v94 = vpack.c.b16 %v88, %v85
    %v95 = vpack.c.b16 %v89, %v86
    %v96 = vpack.c.b16 %v90, %v87
    %vm103 = vcmask 261120
    %v105 = vsel %vm103, %v45, 0
    %107 = vmatprep.subr.bf16.mxu0 0
    %108 = vmatpush1.bf16.msra.mxu0 0
    %109 = vmatprep.subr.bf16.mxu0 0
    %110 = vmatpush1.bf16.msra.mxu0 0
    %111 = vmatprep.subr.bf16.mxu0 0
    %112 = vmatpush1.bf16.msra.mxu0 0
    %113 = vmatprep.subr.bf16.mxu0 0
    %114 = vmatpush1.bf16.msra.mxu0 0
    %115 = vmatprep.subr.bf16.mxu0 0
    %116 = vmatpush1.bf16.msra.mxu0 0
    %117 = vmatprep.subr.bf16.mxu0 0
    %118 = vmatpush1.bf16.msra.mxu0 0
    %119 = vmatprep.subr.bf16.mxu0 %v95
    %120 = vmatpush1.bf16.msra.mxu0 %v94
    %121 = vmatprep.subr.bf16.mxu0 %v92
    %122 = vmatpush1.bf16.msra.mxu0 %v91
    %123 = vmatprep.subr.bf16.mxu0 0
    %124 = vmatpush2.bf16.msra.mxu0 0
    %125 = vmatprep.subr.bf16.mxu0 0
    %126 = vmatpush2.bf16.msra.mxu0 0
    %127 = vmatprep.subr.bf16.mxu0 0
    %128 = vmatpush2.bf16.msra.mxu0 0
    %129 = vmatprep.subr.bf16.mxu0 0
    %130 = vmatpush2.bf16.msra.mxu0 0
    %131 = vmatprep.subr.bf16.mxu0 0
    %132 = vmatpush2.bf16.msra.mxu0 0
    %133 = vmatprep.subr.bf16.mxu0 0
    %134 = vmatpush2.bf16.msra.mxu0 0
    %135 = vmatprep.subr.bf16.mxu0 0
    %136 = vmatpush2.bf16.msra.mxu0 0
    %137 = vmatprep.subr.bf16.mxu0 0
    %138 = vmatpush2.bf16.msra.mxu0 0
    %139 = vmatprep.mubr.bf16.mxu0 0
    %140 = vmatmul.mubr.bf16.gmra.mxu0 %v105
    %v141 = vpop.f32.mrf.mxu0
    %v142 = vadd.f32 %v59, %v141
    %v143 = vpop.f32.mrf.mxu0
    %v144 = vadd.f32 %v63, %v143
    %v145 = vpop.f32.mrf.mxu0
    %v146 = vpop.f32.mrf.mxu0
    %147 = vdwg.mxu0
    %148 = vmatprep.subr.bf16.mxu0 0
    %149 = vmatpush1.bf16.msra.mxu0 0
    %150 = vmatprep.subr.bf16.mxu0 0
    %151 = vmatpush1.bf16.msra.mxu0 0
    %152 = vmatprep.subr.bf16.mxu0 0
    %153 = vmatpush1.bf16.msra.mxu0 0
    %154 = vmatprep.subr.bf16.mxu0 0
    %155 = vmatpush1.bf16.msra.mxu0 0
    %156 = vmatprep.subr.bf16.mxu0 0
    %157 = vmatpush1.bf16.msra.mxu0 0
    %158 = vmatprep.subr.bf16.mxu0 0
    %159 = vmatpush1.bf16.msra.mxu0 0
    %160 = vmatprep.subr.bf16.mxu0 0
    %161 = vmatpush1.bf16.msra.mxu0 %v96
    %162 = vmatprep.subr.bf16.mxu0 0
    %163 = vmatpush1.bf16.msra.mxu0 %v93
    %164 = vmatprep.subr.bf16.mxu0 0
    %165 = vmatpush2.bf16.msra.mxu0 0
    %166 = vmatprep.subr.bf16.mxu0 0
    %167 = vmatpush2.bf16.msra.mxu0 0
    %168 = vmatprep.subr.bf16.mxu0 0
    %169 = vmatpush2.bf16.msra.mxu0 0
    %170 = vmatprep.subr.bf16.mxu0 0
    %171 = vmatpush2.bf16.msra.mxu0 0
    %172 = vmatprep.subr.bf16.mxu0 0
    %173 = vmatpush2.bf16.msra.mxu0 0
    %174 = vmatprep.subr.bf16.mxu0 0
    %175 = vmatpush2.bf16.msra.mxu0 0
    %176 = vmatprep.subr.bf16.mxu0 0
    %177 = vmatpush2.bf16.msra.mxu0 0
    %178 = vmatprep.subr.bf16.mxu0 0
    %179 = vmatpush2.bf16.msra.mxu0 0
    %180 = vmatprep.mubr.bf16.mxu0 0
    %181 = vmatmul.mubr.bf16.gmra.mxu0 %v105
    %v182 = vpop.f32.mrf.mxu0
    %v183 = vadd.f32 %v67, %v182
    %v184 = vpop.f32.mrf.mxu0
    %v185 = vpop.f32.mrf.mxu0
    %v186 = vpop.f32.mrf.mxu0
    %187 = vdwg.mxu0
    %v188 = vpack.c.bf16 %v142, %v142
    %189 = vst [vmem:[#allocation7] sm:$0xf] %v188
    %v190 = vpack.c.bf16 %v144, %v144
    %v191 = vpack.c.bf16 %v183, %v183
    %v194 = vunpack.c.l.b16 %v190
    %v195 = vunpack.c.l.b16 %v191
    %v196 = vpack.c.b16 %v195, %v194
    %198 = vst [vmem:[#allocation8] sm:$0xff] %v196
    // Predicated region
    $region22: #{tpu_custom_call.1} parent=1 // pred_check
      _
    $region23: #{tpu_custom_call.1} parent=1 // pred_check_branch
      %200 = sbr.rel (0) target = $region25
    $region24: #{tpu_custom_call.1} parent=1 // pred_region
      %s202 = ssub.s32 64, 64
      %203 = vsyncadd [#allocation4], %s202
      %s205 = sshll.u32 [#allocation7], 4
      %s206 = int_to_ptr.vmem [resolvable:$true] %s205
      %208 = dma.vmem_to_hbm [thread:$0]  %s206, 64, %s3, [#allocation4]
    $region25: #{tpu_custom_call.1} parent=1 // pred_fallthru
      _
    // Predicated region
    $region26: #{tpu_custom_call.1} parent=1 // pred_check
      _
    $region27: #{tpu_custom_call.1} parent=1 // pred_check_branch
      %210 = sbr.rel (0) target = $region29
    $region28: #{tpu_custom_call.1} parent=1 // pred_region
      %s212 = ssub.s32 128, 128
      %213 = vsyncadd [#allocation9], %s212
      %s215 = sshll.u32 [#allocation8], 4
      %s216 = int_to_ptr.vmem [resolvable:$true] %s215
      %218 = dma.vmem_to_hbm [thread:$0]  %s216, 128, %s4, [#allocation9]
    $region29: #{tpu_custom_call.1} parent=1 // pred_fallthru
      _
    // Predicated region
    $region30: #{tpu_custom_call.1} parent=1 // pred_check
      _
    $region31: #{tpu_custom_call.1} parent=1 // pred_check_branch
      %220 = sbr.rel (0) target = $region33
    $region32: #{tpu_custom_call.1} parent=1 // pred_region
      %221 = dma.done [#allocation4], 64
    $region33: #{tpu_custom_call.1} parent=1 // pred_fallthru
      _
    // Predicated region
    $region34: #{tpu_custom_call.1} parent=1 // pred_check
      _
    $region35: #{tpu_custom_call.1} parent=1 // pred_check_branch
      %223 = sbr.rel (0) target = $region37
    $region36: #{tpu_custom_call.1} parent=1 // pred_region
      %224 = dma.done [#allocation9], 128
    $region37: #{tpu_custom_call.1} parent=1 // pred_fallthru
      _
    %225 = vsyncpa [#allocation3], 1
    %226 = vsyncpa [#allocation6], 1
    %227 = vsyncpa [#allocation4], 1
    %228 = vsyncpa [#allocation9], 1

</llo_original>
